<compile_context>
chip_gen: v5e
topology: v5e:2x2
jax: 0.10.0
libtpu: 0.0.40
codegen_flags: <defaults>
</compile_context>

<pallas_src>
import math

import numpy as np
import jax
import jax.numpy as jnp
from jax.experimental import pallas as pl
from jax.experimental.pallas import tpu as pltpu  # noqa: F401  (TPU backend)

# ----------------------------- config -------------------------------------
B_IN, C_IN, H_IN, W_IN = 2, 4, 16, 16     # input image (NCHW)
PS = 4                                    # patch size
P = (H_IN // PS) * (W_IN // PS)           # 16 patches
D = 32                                    # embed dim
DP = 32                                   # predictor dim

_N_BLK = 12                               # number of per-block param arrays


# ----------------------- in-kernel building blocks -------------------------

def _mm(a, b):
    return jnp.dot(a, b, preferred_element_type=jnp.float32)


def _ln2d(x, g, b):
    mu = jnp.mean(x, axis=-1, keepdims=True)
    var = jnp.mean(jnp.square(x - mu), axis=-1, keepdims=True)
    return (x - mu) * jax.lax.rsqrt(var + 1e-5) * g + b


def _attn2d(q, k, v, scale):
    # Contract feature dims directly -> no materialized k.T.
    s = jax.lax.dot_general(q, k, (((1,), (1,)), ((), ())),
                            preferred_element_type=jnp.float32) * scale
    s = s - jnp.max(s, axis=-1, keepdims=True)
    e = jnp.exp(s)
    p = e * pl.reciprocal(jnp.sum(e, axis=-1, keepdims=True), approx=True)
    return _mm(p, v)


def _block2d(x, refs):
    """Pre-LN transformer block on a 2-D token tile x: [N, d]."""
    ln1_g, ln1_b, wqkv, bqkv, wo, bo, ln2_g, ln2_b, w1, b1, w2, b2 = refs
    d = x.shape[-1]
    h = _ln2d(x, ln1_g[...], ln1_b[...])
    qkv = _mm(h, wqkv[...]) + bqkv[...]          # fused QKV: [N, 3d]
    q, k, v = qkv[:, :d], qkv[:, d:2 * d], qkv[:, 2 * d:]
    a = _attn2d(q, k, v, 1.0 / math.sqrt(d))
    x = x + _mm(a, wo[...]) + bo[...]
    h = _ln2d(x, ln2_g[...], ln2_b[...])
    h = jax.nn.gelu(_mm(h, w1[...]) + b1[...], approximate=True)
    return x + _mm(h, w2[...]) + b2[...]


def _block_param_list(p):
    return [p["ln1_g"], p["ln1_b"], p["Wqkv"], p["bqkv"], p["Wo"], p["bo"],
            p["ln2_g"], p["ln2_b"], p["W1"], p["b1"], p["W2"], p["b2"]]


# --------------------- fused per-group encode_predict kernel ---------------

def _make_group_kernel(Bg):
    def kernel(*refs):
        (x_ref, gv_ref, gm_ref, cv_ref, cmt_ref, cm_ref,
         sctx_ref, spred_ref, enc_pos_ref) = refs[:9]
        i = 9
        enc_blk = refs[i:i + _N_BLK]; i += _N_BLK
        e_lng, e_lnb = refs[i:i + 2]; i += 2
        pin_w, pin_b, mtok, pred_pos_ref = refs[i:i + 4]; i += 4
        pred_blk = refs[i:i + _N_BLK]; i += _N_BLK
        pout_w, pout_b = refs[i:i + 2]; i += 2
        o_ref = refs[i]

        enc_pos = enc_pos_ref[...]
        pred_pos = pred_pos_ref[...]
        cv = cv_ref[...]      # [P, Nv]  top-identity  (ctx rows of z)
        cm = cm_ref[...]      # [P, Nm]  bottom-identity (tgt rows of z)
        cmt = cmt_ref[...]    # [Nm, P]  extracts predicted rows of z

        tile = jnp.zeros(o_ref.shape, jnp.float32)
        for b in range(Bg):
            xg = x_ref[b]          # [P, D]
            gv = gv_ref[b]         # [Nv, P] one-hot gather of valid patches
            gm = gm_ref[b]         # [Nm, P] one-hot gather of masked patches

            # -------- encoder: gather + pos-emb, 1 block, final LN ---------
            h = _mm(gv, xg) + _mm(gv, enc_pos)          # [Nv, D]
            h = _block2d(h, enc_blk)
            ctx = _ln2d(h, e_lng[...], e_lnb[...])      # ctx_rep[b]

            # -------- predictor: proj-in, pos-emb, mask tokens, block ------
            c = _mm(ctx, pin_w[...]) + pin_b[...]       # [Nv, DP]
            c = c + _mm(gv, pred_pos)
            t = mtok[...] + _mm(gm, pred_pos)           # [Nm, DP]
            z = _mm(cv, c) + _mm(cm, t)                 # concat(ctx, tgt): [P, DP]
            z = _block2d(z, pred_blk)
            pred = _mm(cmt, z)                          # z[Nv:, :] -> [Nm, DP]
            pr = _mm(pred, pout_w[...]) + pout_b[...]   # pred_rep[b]: [Nm, D]

            # -------- torch broadcasting-assign scatter (last writer wins) -
            tile = tile + _mm(sctx_ref[b], ctx) + _mm(spred_ref[b], pr)

        o_ref[...] = tile
    return kernel


def fused_encode_predict(params, x_, m_):
    """x_: [Bg, P, D] device array, m_: [Bg, P] host numpy bool."""
    Bg, Pp, d = x_.shape
    mask_indices = np.nonzero(m_)[1].reshape(Bg, -1)
    valid_indices = np.nonzero(~m_)[1].reshape(Bg, -1)
    Nv, Nm = valid_indices.shape[1], mask_indices.shape[1]

    # One-hot gather matrices (static per group -> baked host-side).
    gv = np.zeros((Bg, Nv, Pp), np.float32)
    gm = np.zeros((Bg, Nm, Pp), np.float32)
    for b in range(Bg):
        gv[b, np.arange(Nv), valid_indices[b]] = 1.0
        gm[b, np.arange(Nm), mask_indices[b]] = 1.0

    # Concatenation / extraction selectors for z = [ctx ; tgt].
    cv = np.zeros((Nv + Nm, Nv), np.float32); cv[:Nv] = np.eye(Nv, dtype=np.float32)
    cm = np.zeros((Nv + Nm, Nm), np.float32); cm[Nv:] = np.eye(Nm, dtype=np.float32)
    cmt = np.ascontiguousarray(cm.T)

    # Last-writer-wins selection matrices reproducing torch's
    #   x_like_[:, valid_indices] = ctx_rep ; x_like_[:, mask_indices] = pred_rep
    # broadcasting-assignment semantics (all output rows identical).
    writer = {}
    for b in range(Bg):
        for t in range(Nv):
            writer[int(valid_indices[b, t])] = ("ctx", b, t)
    for b in range(Bg):
        for t in range(Nm):
            writer[int(mask_indices[b, t])] = ("pred", b, t)
    s_ctx = np.zeros((Bg, Pp, Nv), np.float32)
    s_pred = np.zeros((Bg, Pp, Nm), np.float32)
    for pos, (kind, b, t) in writer.items():
        (s_ctx if kind == "ctx" else s_pred)[b, pos, t] = 1.0

    enc, prd = params["encoder"], params["predictor"]
    args = [x_,
            jnp.asarray(gv), jnp.asarray(gm),
            jnp.asarray(cv), jnp.asarray(cmt), jnp.asarray(cm),
            jnp.asarray(s_ctx), jnp.asarray(s_pred),
            enc["pos_emb"], *_block_param_list(enc["block"]),
            enc["ln_g"], enc["ln_b"],
            prd["proj_in_W"], prd["proj_in_b"], prd["mask_token"], prd["pos_emb"],
            *_block_param_list(prd["block"]),
            prd["proj_out_W"], prd["proj_out_b"]]

    # Whole-array VMEM blocks, no grid: total params/activations << VMEM,
    # so everything lives on-chip and this is a single launch per group.
    return pl.pallas_call(
        _make_group_kernel(Bg),
        out_shape=jax.ShapeDtypeStruct((Pp, d), jnp.float32),
    )(*args)


# ----------------------------- embedding -----------------------------------

def _patch_embed_kernel(x_ref, w_ref, b_ref, o_ref):
    o_ref[...] = jnp.dot(x_ref[...], w_ref[...],
                         preferred_element_type=jnp.float32) + b_ref[...]


def embedding_forward(p, x_nchw):
    """Patch-embed conv (as one Pallas matmul) + deterministic mask."""
    B, C, H, W = x_nchw.shape
    nP = (H // PS) * (W // PS)
    xp = x_nchw.reshape(B, C, H // PS, PS, W // PS, PS)
    xp = xp.transpose(0, 2, 4, 1, 3, 5).reshape(B * nP, C * PS * PS)
    emb = pl.pallas_call(
        _patch_embed_kernel,
        out_shape=jax.ShapeDtypeStruct((B * nP, D), jnp.float32),
    )(xp, p["W_patch"], p["b_patch"]).reshape(B, nP, D)

    # Deterministic boolean mask (True = masked patch); counts differ per
    # sample so that group_samples produces multiple groups.
    mask = np.zeros((B, nP), dtype=bool)
    for b in range(B):
        n_mask = min(nP - 1, 4 + 4 * b)
        mask[b, nP - n_mask:] = True
    return emb, mask


# ----------------------------- wrapper forward ------------------------------

def group_samples(x, mask):
    """Host-side grouping by number of masked patches (mirrors torch code)."""
    true_counts = mask.sum(axis=1)
    grouped = {}
    for idx, count in enumerate(true_counts):
        count = int(count)
        if count not in grouped:
            grouped[count] = ([], [], [])
        grouped[count][0].append(idx)
        grouped[count][1].append(x[idx])
        grouped[count][2].append(mask[idx])
    gi, gx, gm = [], [], []
    for count, (i_, d_, m_) in grouped.items():
        gi.append(i_)
        gx.append(jnp.stack(d_))
        gm.append(np.stack(m_))
    return gi, gx, gm


def complete_upstream_forward(params, x):
    emb, mask = embedding_forward(params["embedding"], x)
    B = emb.shape[0]
    grouped_indices, grouped_x, grouped_mask = group_samples(emb, mask)
    tiles = [None] * B
    for i_, x_, m_ in zip(grouped_indices, grouped_x, grouped_mask):
        tile = fused_encode_predict(params, x_, m_)
        # Torch quirk: every row of x_like_ within a group is identical, so
        # each member of the group receives the same tile.
        for i_one in i_:
            tiles[i_one] = tile
    x_like = jnp.stack(tiles, axis=0)   # single assembly op, no scatters
    return x_like, jnp.asarray(mask)


# ----------------------------- params --------------------------------------

def _init_block(key, d):
    ks = jax.random.split(key, 4)
    n = lambda k, s: 0.02 * jax.random.normal(k, s, jnp.float32)
    return dict(
        ln1_g=jnp.ones((1, d), jnp.float32), ln1_b=jnp.zeros((1, d), jnp.float32),
        Wqkv=n(ks[0], (d, 3 * d)), bqkv=jnp.zeros((1, 3 * d), jnp.float32),
        Wo=n(ks[1], (d, d)), bo=jnp.zeros((1, d), jnp.float32),
        ln2_g=jnp.ones((1, d), jnp.float32), ln2_b=jnp.zeros((1, d), jnp.float32),
        W1=n(ks[2], (d, 4 * d)), b1=jnp.zeros((1, 4 * d), jnp.float32),
        W2=n(ks[3], (4 * d, d)), b2=jnp.zeros((1, d), jnp.float32),
    )


def init_params(key):
    k_emb, k_enc, k_pred = jax.random.split(key, 3)
    n = lambda k, s: 0.02 * jax.random.normal(k, s, jnp.float32)

    ke = jax.random.split(k_emb, 2)
    embedding = dict(
        W_patch=n(ke[0], (C_IN * PS * PS, D)),
        b_patch=jnp.zeros((1, D), jnp.float32),
    )
    ken = jax.random.split(k_enc, 2)
    encoder = dict(
        pos_emb=n(ken[0], (P, D)),
        block=_init_block(ken[1], D),
        ln_g=jnp.ones((1, D), jnp.float32),
        ln_b=jnp.zeros((1, D), jnp.float32),
    )
    kp = jax.random.split(k_pred, 5)
    predictor = dict(
        proj_in_W=n(kp[0], (D, DP)), proj_in_b=jnp.zeros((1, DP), jnp.float32),
        mask_token=n(kp[1], (1, DP)),
        pos_emb=n(kp[2], (P, DP)),
        block=_init_block(kp[3], DP),
        proj_out_W=n(kp[4], (DP, D)), proj_out_b=jnp.zeros((1, D), jnp.float32),
    )
    return dict(embedding=embedding, encoder=encoder, predictor=predictor)


# ----------------------------- main -----------------------------------------

if __name__ == "__main__":
    key = jax.random.PRNGKey(0)
    pkey, xkey = jax.random.split(key)
    params = init_params(pkey)
    x = jax.random.normal(xkey, (B_IN, C_IN, H_IN, W_IN), dtype=jnp.float32)

    # TODO(synk): group_samples / nonzero index bookkeeping stays host-side
    # Python (data-dependent shapes), exactly like the torch .item()/nonzero().
    x_like, mask = complete_upstream_forward(params, x)
    jax.block_until_ready(x_like)

    assert x_like.shape == (B_IN, P, D)
    assert mask.shape == (B_IN, P)
    assert bool(jnp.all(jnp.isfinite(x_like)))
    print("KERNEL_OK")
</pallas_src>

<mosaic_0001>
module attributes {stable_mosaic.version = 11 : i64} {
  func.func @_patch_embed_kernel(%arg0: memref<32x64xf32, #tpu.memory_space<vmem>>, %arg1: memref<64x32xf32, #tpu.memory_space<vmem>>, %arg2: memref<1x32xf32, #tpu.memory_space<vmem>>, %arg3: memref<32x32xf32, #tpu.memory_space<vmem>>) attributes {dimension_semantics = [], scalar_prefetch = 0 : i64, scratch_operands = 0 : i64, tpu.core_type = #tpu.core_type<tc>} {
    %c0 = arith.constant 0 : index
    %c0_0 = arith.constant 0 : index
    %0 = vector.load %arg0[%c0, %c0_0] : memref<32x64xf32, #tpu.memory_space<vmem>>, vector<32x64xf32>
    %c0_1 = arith.constant 0 : index
    %c0_2 = arith.constant 0 : index
    %1 = vector.load %arg1[%c0_1, %c0_2] : memref<64x32xf32, #tpu.memory_space<vmem>>, vector<64x32xf32>
    %cst = arith.constant dense<0.000000e+00> : vector<32x32xf32>
    %2 = tpu.matmul %0, %1, %cst {dimension_numbers = #tpu.dot_dimension_numbers<[1], [0], [0], [1], [0, 0, 1, 1], [], []>} : vector<32x64xf32>, vector<64x32xf32>, vector<32x32xf32> -> vector<32x32xf32>
    %c0_3 = arith.constant 0 : index
    %c0_4 = arith.constant 0 : index
    %3 = vector.load %arg2[%c0_3, %c0_4] : memref<1x32xf32, #tpu.memory_space<vmem>>, vector<1x32xf32>
    %4 = vector.broadcast %3 : vector<1x32xf32> to vector<32x32xf32>
    %5 = arith.addf %2, %4 : vector<32x32xf32>
    %c0_5 = arith.constant 0 : index
    %c0_6 = arith.constant 0 : index
    %6 = vector.load %arg3[%c0_5, %c0_6] : memref<32x32xf32, #tpu.memory_space<vmem>>, vector<32x32xf32>
    tpu.vector_store %arg3[%c0_5, %c0_6], %5 {strides = array<i32>} : memref<32x32xf32, #tpu.memory_space<vmem>>, vector<32x32xf32>,
    return
  }
}

</mosaic_0001>

<llo_original>
// kernel: tpu_custom_call.1
$region0: #{tpu_custom_call.1}
  #allocation0 [shape = 'u32[]', space=smem, size = 0x4, offset = 0x4, fixed_abs, tag = 'smem constant byte address 0x4 - core index']
  #allocation1 [shape = 'u32[72,128]{1,0:T(1,128)}', space=vmem, size = 0x9000, scoped, tag = 'internal scratch']
  %s0 = inlined_call_operand.vmem [shape: f32[32,64], index: 0, kind: input, shape index: {}]
  %s1 = inlined_call_operand.vmem [shape: f32[64,32], index: 1, kind: input, shape index: {}]
  %s2 = inlined_call_operand.vmem [shape: f32[1,32], index: 2, kind: input, shape index: {}]
  %s3 = inlined_call_operand.hbm [shape: f32[32,32], index: 3, kind: output, shape index: {}]
  %s4 = sld [smem:[#allocation0]]
  $region22: #{tpu_custom_call.1} parent=0
    _
  %s6 = ssub.s32 1, %s4
  %s7 = scalar_select 0, %s6, %s4
  $region1: #{tpu_custom_call.1} parent=0
    #allocation2 [shape = 'u8[16384]{0}', space=vmem, size = 0x4000, scoped, tag = 'output window, operand 0, single buffered']
    #allocation3 [shape = 's32[1]{0}', space=sflag, size = 0x4, scoped, tag = 'scoped memory for tpu_custom_call.1']
    %8 = vsyncpa [#allocation3], 0
    // Predicated region
    $region2: #{tpu_custom_call.1} parent=1 // pred_check
      _
    $region3: #{tpu_custom_call.1} parent=1 // pred_check_branch
      %10 = sbr.rel (0) target = $region5
    $region4: #{tpu_custom_call.1} parent=1 // pred_region
      _
    $region5: #{tpu_custom_call.1} parent=1 // pred_fallthru
      _
    // Predicated region
    $region6: #{tpu_custom_call.1} parent=1 // pred_check
      _
    $region7: #{tpu_custom_call.1} parent=1 // pred_check_branch
      %12 = sbr.rel (0) target = $region9
    $region8: #{tpu_custom_call.1} parent=1 // pred_region
      _
    $region9: #{tpu_custom_call.1} parent=1 // pred_fallthru
      _
    // Predicated region
    $region10: #{tpu_custom_call.1} parent=1 // pred_check
      _
    $region11: #{tpu_custom_call.1} parent=1 // pred_check_branch
      %14 = sbr.rel (0) target = $region13
    $region12: #{tpu_custom_call.1} parent=1 // pred_region
      _
    $region13: #{tpu_custom_call.1} parent=1 // pred_fallthru
      _
    %v15 = vld [vmem:[%s0] sm:$0xff]
    %v16 = vld [vmem:[%s0 + $0x8] sm:$0xff]
    %v17 = vld [vmem:[%s0 + $0x10] sm:$0xff]
    %v18 = vld [vmem:[%s0 + $0x18] sm:$0xff]
    %v19 = vld [vmem:[%s1] sm:$0xff]
    %v20 = vld [vmem:[%s1 + $0x8] sm:$0xff]
    %v21 = vld [vmem:[%s1 + $0x10] sm:$0xff]
    %v22 = vld [vmem:[%s1 + $0x18] sm:$0xff]
    %v23 = vld [vmem:[%s1 + $0x20] sm:$0xff]
    %v24 = vld [vmem:[%s1 + $0x28] sm:$0xff]
    %v25 = vld [vmem:[%s1 + $0x30] sm:$0xff]
    %v26 = vld [vmem:[%s1 + $0x38] sm:$0xff]
    %v27 = vld [vmem:[%s2] sm:$0x1]
    %v29 = vperm.slane %v27, 0
    %vm31 = vcmask 523264
    %v33 = vsel %vm31, %v15, 0
    %v36 = vsel %vm31, %v16, 0
    %v39 = vsel %vm31, %v17, 0
    %v42 = vsel %vm31, %v18, 0
    %44 = vmatpush.msra.mxu0 0.0
    %45 = vmatpush.msra.mxu0 0.0
    %46 = vmatpush.msra.mxu0 0.0
    %47 = vmatpush.msra.mxu0 0.0
    %48 = vmatpush.msra.mxu0 0.0
    %49 = vmatpush.msra.mxu0 0.0
    %50 = vmatpush.msra.mxu0 0.0
    %51 = vmatpush.msra.mxu0 0.0
    %52 = vmatpush.msra.mxu0 %v26
    %53 = vmatpush.msra.mxu0 %v25
    %54 = vmatpush.msra.mxu0 %v24
    %55 = vmatpush.msra.mxu0 %v23
    %56 = vmatpush.msra.mxu0 %v22
    %57 = vmatpush.msra.mxu0 %v21
    %58 = vmatpush.msra.mxu0 %v20
    %59 = vmatpush.msra.mxu0 %v19
    %60 = vmatmul.f32.gmra.mxu0 %v33
    %v61 = vpop.f32.mrf.mxu0
    %v62 = vadd.f32 %v29, %v61
    %63 = vmatmul.f32.gmra.mxu0 %v36
    %v64 = vpop.f32.mrf.mxu0
    %v65 = vadd.f32 %v29, %v64
    %66 = vmatmul.f32.gmra.mxu0 %v39
    %v67 = vpop.f32.mrf.mxu0
    %v68 = vadd.f32 %v29, %v67
    %69 = vmatmul.f32.gmra.mxu0 %v42
    %v70 = vpop.f32.mrf.mxu0
    %v71 = vadd.f32 %v29, %v70
    %72 = vdwg.mxu0
    %vm73 = vcmask 261120
    %74 = vst.msk [vmem:[#allocation2] sm:$0xff] %vm73, %v62
    %75 = vst.msk [vmem:[#allocation2 + $0x8] sm:$0xff] %vm73, %v65
    %76 = vst.msk [vmem:[#allocation2 + $0x10] sm:$0xff] %vm73, %v68
    %77 = vst.msk [vmem:[#allocation2 + $0x18] sm:$0xff] %vm73, %v71
    // Predicated region
    $region14: #{tpu_custom_call.1} parent=1 // pred_check
      _
    $region15: #{tpu_custom_call.1} parent=1 // pred_check_branch
      %79 = sbr.rel (0) target = $region17
    $region16: #{tpu_custom_call.1} parent=1 // pred_region
      %81 = vsyncadd [#allocation3], 0
      %s82 = sshll.u32 [#allocation2], 4
      %s83 = int_to_ptr.vmem [resolvable:$true] %s82
      %s84 = sshll.u32 %s3, 4
      %s85 = int_to_ptr.hbm [resolvable:$true] %s84
      %90 = dma.vmem_to_hbm [thread:$0]  %s83, 512, %s85, [#allocation3], 128, 128, 8
    $region17: #{tpu_custom_call.1} parent=1 // pred_fallthru
      _
    // Predicated region
    $region18: #{tpu_custom_call.1} parent=1 // pred_check
      _
    $region19: #{tpu_custom_call.1} parent=1 // pred_check_branch
      %92 = sbr.rel (0) target = $region21
    $region20: #{tpu_custom_call.1} parent=1 // pred_region
      %94 = dma.done [#allocation3], 512
    $region21: #{tpu_custom_call.1} parent=1 // pred_fallthru
      _
    %95 = vsyncpa [#allocation3], 1

</llo_original>
